<compile_context>
chip_gen: v5e
topology: v5e:2x2
jax: 0.10.0
libtpu: 0.0.40
codegen_flags: <defaults>
</compile_context>

<pallas_src>
import math

import jax
import jax.numpy as jnp
from jax import lax
from jax.experimental import pallas as pl
from jax.experimental.pallas import tpu as pltpu


# ---------------------------------------------------------------------------
# generation-aware VMEM sizing helpers
# ---------------------------------------------------------------------------
def _vmem_capacity_bytes():
    try:
        return int(pltpu.get_tpu_info().vmem_capacity_bytes)
    except Exception:
        return 64 << 20  # conservative: v7x per-TensorCore VMEM


def _vmem_estimate(tq, L, D):
    """Rough per-grid-step VMEM footprint (bytes), double-buffering included."""
    return (2 * tq * D * 4          # q block (f32, double-buffered)
            + 2 * 2 * L * D * 4     # k, v blocks (f32, double-buffered)
            + 2 * 4 * D * D * 2     # 4 resident D x D bf16 weights (worst case 2 bufs)
            + 2 * tq * D * 4        # output block (f32, double-buffered)
            + 2 * L * D * 2         # kp / vp bf16 scratch
            + tq * D * 2            # attention-output bf16 scratch
            + 4 * tq * L * 4)       # live f32 score tiles (headroom)


def _choose_tq(L, D):
    """Pick a query-tile size that keeps the fused kernel inside ~half of VMEM."""
    budget = _vmem_capacity_bytes() // 2
    tq = L
    while tq > 256 and _vmem_estimate(tq, L, D) > budget:
        tq = max(256, ((tq // 2) + 7) // 8 * 8)   # keep multiple of 8 when < L
    return tq


# ---------------------------------------------------------------------------
# fused MHA kernel: grid = (B, n_query_tiles)
#   step (b, 0)      : project K/V for batch b into VMEM scratch
#   every step (b, q): project the Q tile, run per-head softmax-attention into
#                      an (tq, D) scratch slab, fuse the output projection,
#                      store one lane-dense (tq, D) f32 tile.
# ---------------------------------------------------------------------------
def _make_mha_kernel(n_head, dh):
    def kernel(q_ref, k_ref, v_ref, wq_ref, wk_ref, wv_ref, wo_ref,
               b_qkv_ref, b_o_ref, o_ref, kp_sc, vp_sc, attn_sc):
        qi = pl.program_id(1)

        # K/V projection once per batch element (cached in scratch across the
        # inner "arbitrary" query-tile axis).
        @pl.when(qi == 0)
        def _():
            k_in = k_ref[...].astype(jnp.bfloat16)
            v_in = v_ref[...].astype(jnp.bfloat16)
            kp_sc[...] = (jnp.dot(k_in, wk_ref[...],
                                  preferred_element_type=jnp.float32)
                          + b_qkv_ref[1:2, :]).astype(kp_sc.dtype)
            vp_sc[...] = (jnp.dot(v_in, wv_ref[...],
                                  preferred_element_type=jnp.float32)
                          + b_qkv_ref[2:3, :]).astype(vp_sc.dtype)

        # Q projection for this query tile (scale already folded into wq/bq).
        q_in = q_ref[...].astype(jnp.bfloat16)
        qp = (jnp.dot(q_in, wq_ref[...], preferred_element_type=jnp.float32)
              + b_qkv_ref[0:1, :]).astype(jnp.bfloat16)

        # Per-head attention; each head writes its (tq, dh) result directly
        # into the scratch slab (no list accumulation, no concatenate).
        for h in range(n_head):
            sl = slice(h * dh, (h + 1) * dh)
            kh = kp_sc[:, sl]                                   # (L, dh) bf16
            vh = vp_sc[:, sl]                                   # (L, dh) bf16
            # contract on dh of both operands -> no explicit k transpose
            s = lax.dot_general(qp[:, sl], kh, (((1,), (1,)), ((), ())),
                                preferred_element_type=jnp.float32)  # (tq, L)
            s = s - jnp.max(s, axis=-1, keepdims=True)
            p = jnp.exp(s)
            p = p * pl.reciprocal(jnp.sum(p, axis=-1, keepdims=True),
                                  approx=False)
            attn_sc[:, sl] = jnp.dot(p.astype(jnp.bfloat16), vh,
                                     preferred_element_type=jnp.float32
                                     ).astype(attn_sc.dtype)

        # Fused output projection -> single lane-dense (tq, D) f32 store.
        o_ref[...] = (jnp.dot(attn_sc[...], wo_ref[...],
                              preferred_element_type=jnp.float32)
                      + b_o_ref[...]).astype(o_ref.dtype)

    return kernel


# ---------------------------------------------------------------------------
# MultiHeadAttention forward
# ---------------------------------------------------------------------------
def prepare_params(params, n_head):
    """One-time prep outside the hot path: transpose weights to (in, out),
    cast to bf16, and fold the 1/sqrt(d_head) scale into the query projection."""
    D = params["w_q"].shape[0]
    dh = D // n_head
    scale = 1.0 / math.sqrt(dh)
    return {
        "wq_t": (params["w_q"].T * scale).astype(jnp.bfloat16),
        "wk_t": params["w_k"].T.astype(jnp.bfloat16),
        "wv_t": params["w_v"].T.astype(jnp.bfloat16),
        "wo_t": params["w_concat"].T.astype(jnp.bfloat16),
        "b_qkv": jnp.stack(
            [params["b_q"] * scale, params["b_k"], params["b_v"]], axis=0
        ).astype(jnp.float32),                                   # (3, D)
        "b_o": params["b_concat"].reshape(1, D).astype(jnp.float32),
    }


def multi_head_attention(prep, q, k, v, n_head):
    B, L, D = q.shape
    dh = D // n_head
    tq = _choose_tq(L, D)
    n_qt = pl.cdiv(L, tq)

    q_spec = pl.BlockSpec((pl.Squeezed(), tq, D), lambda b, qi: (b, qi, 0))
    kv_spec = pl.BlockSpec((pl.Squeezed(), L, D), lambda b, qi: (b, 0, 0))
    w_spec = pl.BlockSpec((D, D), lambda b, qi: (0, 0))          # VMEM-resident
    bqkv_spec = pl.BlockSpec((3, D), lambda b, qi: (0, 0))
    bo_spec = pl.BlockSpec((1, D), lambda b, qi: (0, 0))
    o_spec = pl.BlockSpec((pl.Squeezed(), tq, D), lambda b, qi: (b, qi, 0))

    cp_kwargs = dict(dimension_semantics=("parallel", "arbitrary"))
    est = _vmem_estimate(tq, L, D)
    if est > (24 << 20):  # only override the scoped-VMEM default when needed
        cp_kwargs["vmem_limit_bytes"] = int(min(est * 5 // 4,
                                                _vmem_capacity_bytes()))

    return pl.pallas_call(
        _make_mha_kernel(n_head, dh),
        out_shape=jax.ShapeDtypeStruct((B, L, D), jnp.float32),
        grid=(B, n_qt),
        in_specs=[q_spec, kv_spec, kv_spec,
                  w_spec, w_spec, w_spec, w_spec,
                  bqkv_spec, bo_spec],
        out_specs=o_spec,
        scratch_shapes=[pltpu.VMEM((L, D), jnp.bfloat16),    # kp cache
                        pltpu.VMEM((L, D), jnp.bfloat16),    # vp cache
                        pltpu.VMEM((tq, D), jnp.bfloat16)],  # attention output slab
        compiler_params=pltpu.CompilerParams(**cp_kwargs),
    )(q, k, v, prep["wq_t"], prep["wk_t"], prep["wv_t"], prep["wo_t"],
      prep["b_qkv"], prep["b_o"])


# ---------------------------------------------------------------------------
# Pure-JAX f32 reference for verification
# ---------------------------------------------------------------------------
def reference_mha(params, q, k, v, n_head):
    B, L, D = q.shape
    dh = D // n_head

    def lin(x, w, b):
        return x @ w.T + b

    def split(t):
        return t.reshape(B, L, n_head, dh).transpose(0, 2, 1, 3)

    qh = split(lin(q, params["w_q"], params["b_q"]))
    kh = split(lin(k, params["w_k"], params["b_k"]))
    vh = split(lin(v, params["w_v"], params["b_v"]))
    s = jnp.einsum("bhqd,bhkd->bhqk", qh, kh) / math.sqrt(dh)
    p = jax.nn.softmax(s, axis=-1)
    o = jnp.einsum("bhqk,bhkd->bhqd", p, vh)
    o = o.transpose(0, 2, 1, 3).reshape(B, L, D)
    return lin(o, params["w_concat"], params["b_concat"])


# ---------------------------------------------------------------------------
if __name__ == "__main__":
    d_model = 32
    n_head = 4
    batch = 2
    seq = 8

    key = jax.random.PRNGKey(0)
    keys = jax.random.split(key, 11)

    bound = 1.0 / math.sqrt(d_model)  # nn.Linear default init range
    params = {
        "w_q": jax.random.uniform(keys[0], (d_model, d_model), jnp.float32, -bound, bound),
        "b_q": jax.random.uniform(keys[1], (d_model,), jnp.float32, -bound, bound),
        "w_k": jax.random.uniform(keys[2], (d_model, d_model), jnp.float32, -bound, bound),
        "b_k": jax.random.uniform(keys[3], (d_model,), jnp.float32, -bound, bound),
        "w_v": jax.random.uniform(keys[4], (d_model, d_model), jnp.float32, -bound, bound),
        "b_v": jax.random.uniform(keys[5], (d_model,), jnp.float32, -bound, bound),
        "w_concat": jax.random.uniform(keys[6], (d_model, d_model), jnp.float32, -bound, bound),
        "b_concat": jax.random.uniform(keys[7], (d_model,), jnp.float32, -bound, bound),
    }

    q = jax.random.normal(keys[8], (batch, seq, d_model), jnp.float32)
    k = jax.random.normal(keys[9], (batch, seq, d_model), jnp.float32)
    v = jax.random.normal(keys[10], (batch, seq, d_model), jnp.float32)

    prep = prepare_params(params, n_head)
    out = multi_head_attention(prep, q, k, v, n_head)
    out = jax.block_until_ready(out)

    ref = reference_mha(params, q, k, v, n_head)
    assert out.shape == (batch, seq, d_model)
    # bf16 MXU operands (f32 accumulation) -> loose tolerance vs f32 reference
    assert jnp.allclose(out, ref, atol=5e-2, rtol=5e-2), "mismatch vs reference"

    print("KERNEL_OK")
</pallas_src>

<mosaic_0001>
module attributes {stable_mosaic.version = 11 : i64} {
  func.func @kernel(%arg0: i32, %arg1: i32, %arg2: memref<1x8x32xf32, #tpu.memory_space<vmem>>, %arg3: memref<1x8x32xf32, #tpu.memory_space<vmem>>, %arg4: memref<1x8x32xf32, #tpu.memory_space<vmem>>, %arg5: memref<32x32xbf16, #tpu.memory_space<vmem>>, %arg6: memref<32x32xbf16, #tpu.memory_space<vmem>>, %arg7: memref<32x32xbf16, #tpu.memory_space<vmem>>, %arg8: memref<32x32xbf16, #tpu.memory_space<vmem>>, %arg9: memref<3x32xf32, #tpu.memory_space<vmem>>, %arg10: memref<1x32xf32, #tpu.memory_space<vmem>>, %arg11: memref<1x8x32xf32, #tpu.memory_space<vmem>>, %arg12: memref<8x32xbf16, #tpu.memory_space<vmem>>, %arg13: memref<8x32xbf16, #tpu.memory_space<vmem>>, %arg14: memref<8x32xbf16, #tpu.memory_space<vmem>>) attributes {dimension_semantics = [#tpu.dimension_semantics<parallel>, #tpu.dimension_semantics<arbitrary>], iteration_bounds = array<i64: 2, 1>, scalar_prefetch = 0 : i64, scratch_operands = 3 : i64, tpu.core_type = #tpu.core_type<tc>, window_params = [{transform_indices = @transform_0, window_bounds = array<i64: 1, 8, 32>}, {transform_indices = @transform_1, window_bounds = array<i64: 1, 8, 32>}, {transform_indices = @transform_2, window_bounds = array<i64: 1, 8, 32>}, {pipeline_mode = #tpu.pipeline_mode<synchronous>, transform_indices = @transform_3, window_bounds = array<i64: 32, 32>}, {pipeline_mode = #tpu.pipeline_mode<synchronous>, transform_indices = @transform_4, window_bounds = array<i64: 32, 32>}, {pipeline_mode = #tpu.pipeline_mode<synchronous>, transform_indices = @transform_5, window_bounds = array<i64: 32, 32>}, {pipeline_mode = #tpu.pipeline_mode<synchronous>, transform_indices = @transform_6, window_bounds = array<i64: 32, 32>}, {pipeline_mode = #tpu.pipeline_mode<synchronous>, transform_indices = @transform_7, window_bounds = array<i64: 3, 32>}, {pipeline_mode = #tpu.pipeline_mode<synchronous>, transform_indices = @transform_8, window_bounds = array<i64: 1, 32>}, {transform_indices = @transform_9, window_bounds = array<i64: 1, 8, 32>}]} {
    %c0_i32 = arith.constant 0 : i32
    %0 = arith.cmpi eq, %arg1, %c0_i32 : i32
    %1 = arith.extui %0 : i1 to i32
    %c0_i32_0 = arith.constant 0 : i32
    %2 = arith.cmpi ne, %1, %c0_i32_0 : i32
    scf.if %2 {
      %c0_54 = arith.constant 0 : index
      %c0_55 = arith.constant 0 : index
      %c0_56 = arith.constant 0 : index
      %93 = vector.load %arg3[%c0_54, %c0_55, %c0_56] : memref<1x8x32xf32, #tpu.memory_space<vmem>>, vector<1x8x32xf32>
      %94 = vector.shape_cast %93 : vector<1x8x32xf32> to vector<8x32xf32>
      %95 = arith.truncf %94 : vector<8x32xf32> to vector<8x32xbf16>
      %c0_57 = arith.constant 0 : index
      %c0_58 = arith.constant 0 : index
      %c0_59 = arith.constant 0 : index
      %96 = vector.load %arg4[%c0_57, %c0_58, %c0_59] : memref<1x8x32xf32, #tpu.memory_space<vmem>>, vector<1x8x32xf32>
      %97 = vector.shape_cast %96 : vector<1x8x32xf32> to vector<8x32xf32>
      %98 = arith.truncf %97 : vector<8x32xf32> to vector<8x32xbf16>
      %c0_60 = arith.constant 0 : index
      %c0_61 = arith.constant 0 : index
      %99 = vector.load %arg6[%c0_60, %c0_61] : memref<32x32xbf16, #tpu.memory_space<vmem>>, vector<32x32xbf16>
      %cst_62 = arith.constant dense<0.000000e+00> : vector<8x32xf32>
      %100 = tpu.matmul %95, %99, %cst_62 {dimension_numbers = #tpu.dot_dimension_numbers<[1], [0], [0], [1], [0, 0, 1, 1], [], []>} : vector<8x32xbf16>, vector<32x32xbf16>, vector<8x32xf32> -> vector<8x32xf32>
      %c1 = arith.constant 1 : index
      %c0_63 = arith.constant 0 : index
      %101 = vector.load %arg9[%c1, %c0_63] : memref<3x32xf32, #tpu.memory_space<vmem>>, vector<1x32xf32>
      %102 = vector.broadcast %101 : vector<1x32xf32> to vector<8x32xf32>
      %103 = arith.addf %100, %102 : vector<8x32xf32>
      %104 = arith.truncf %103 : vector<8x32xf32> to vector<8x32xbf16>
      %c0_64 = arith.constant 0 : index
      %c0_65 = arith.constant 0 : index
      %105 = vector.load %arg12[%c0_64, %c0_65] : memref<8x32xbf16, #tpu.memory_space<vmem>>, vector<8x32xbf16>
      tpu.vector_store %arg12[%c0_64, %c0_65], %104 {strides = array<i32>} : memref<8x32xbf16, #tpu.memory_space<vmem>>, vector<8x32xbf16>,
      %c0_66 = arith.constant 0 : index
      %c0_67 = arith.constant 0 : index
      %106 = vector.load %arg7[%c0_66, %c0_67] : memref<32x32xbf16, #tpu.memory_space<vmem>>, vector<32x32xbf16>
      %cst_68 = arith.constant dense<0.000000e+00> : vector<8x32xf32>
      %107 = tpu.matmul %98, %106, %cst_68 {dimension_numbers = #tpu.dot_dimension_numbers<[1], [0], [0], [1], [0, 0, 1, 1], [], []>} : vector<8x32xbf16>, vector<32x32xbf16>, vector<8x32xf32> -> vector<8x32xf32>
      %c2 = arith.constant 2 : index
      %c0_69 = arith.constant 0 : index
      %108 = vector.load %arg9[%c2, %c0_69] : memref<3x32xf32, #tpu.memory_space<vmem>>, vector<1x32xf32>
      %109 = vector.broadcast %108 : vector<1x32xf32> to vector<8x32xf32>
      %110 = arith.addf %107, %109 : vector<8x32xf32>
      %111 = arith.truncf %110 : vector<8x32xf32> to vector<8x32xbf16>
      %c0_70 = arith.constant 0 : index
      %c0_71 = arith.constant 0 : index
      %112 = vector.load %arg13[%c0_70, %c0_71] : memref<8x32xbf16, #tpu.memory_space<vmem>>, vector<8x32xbf16>
      tpu.vector_store %arg13[%c0_70, %c0_71], %111 {strides = array<i32>} : memref<8x32xbf16, #tpu.memory_space<vmem>>, vector<8x32xbf16>,
    } else {
    }
    %c0 = arith.constant 0 : index
    %c0_1 = arith.constant 0 : index
    %c0_2 = arith.constant 0 : index
    %3 = vector.load %arg2[%c0, %c0_1, %c0_2] : memref<1x8x32xf32, #tpu.memory_space<vmem>>, vector<1x8x32xf32>
    %4 = vector.shape_cast %3 : vector<1x8x32xf32> to vector<8x32xf32>
    %5 = arith.truncf %4 : vector<8x32xf32> to vector<8x32xbf16>
    %c0_3 = arith.constant 0 : index
    %c0_4 = arith.constant 0 : index
    %6 = vector.load %arg5[%c0_3, %c0_4] : memref<32x32xbf16, #tpu.memory_space<vmem>>, vector<32x32xbf16>
    %cst = arith.constant dense<0.000000e+00> : vector<8x32xf32>
    %7 = tpu.matmul %5, %6, %cst {dimension_numbers = #tpu.dot_dimension_numbers<[1], [0], [0], [1], [0, 0, 1, 1], [], []>} : vector<8x32xbf16>, vector<32x32xbf16>, vector<8x32xf32> -> vector<8x32xf32>
    %c0_5 = arith.constant 0 : index
    %c0_6 = arith.constant 0 : index
    %8 = vector.load %arg9[%c0_5, %c0_6] : memref<3x32xf32, #tpu.memory_space<vmem>>, vector<1x32xf32>
    %9 = vector.broadcast %8 : vector<1x32xf32> to vector<8x32xf32>
    %10 = arith.addf %7, %9 : vector<8x32xf32>
    %11 = arith.truncf %10 : vector<8x32xf32> to vector<8x32xbf16>
    %c0_7 = arith.constant 0 : index
    %c0_8 = arith.constant 0 : index
    %12 = vector.load %arg12[%c0_7, %c0_8] : memref<8x32xbf16, #tpu.memory_space<vmem>>, vector<8x8xbf16>
    %c0_9 = arith.constant 0 : index
    %c0_10 = arith.constant 0 : index
    %13 = vector.load %arg13[%c0_9, %c0_10] : memref<8x32xbf16, #tpu.memory_space<vmem>>, vector<8x8xbf16>
    %14 = vector.extract_strided_slice %11 {offsets = [0, 0], sizes = [8, 8], strides = [1, 1]} : vector<8x32xbf16> to vector<8x8xbf16>
    %cst_11 = arith.constant dense<0.000000e+00> : vector<8x8xf32>
    %15 = tpu.matmul %14, %12, %cst_11 {dimension_numbers = #tpu.dot_dimension_numbers<[1], [1], [0], [0], [0, 0, 1, 0], [], []>} : vector<8x8xbf16>, vector<8x8xbf16>, vector<8x8xf32> -> vector<8x8xf32>
    %cst_12 = arith.constant dense<0xFF800000> : vector<8xf32>
    %16 = vector.multi_reduction <maximumf>, %15, %cst_12 [1] : vector<8x8xf32> to vector<8xf32>
    %17 = vector.shape_cast %16 : vector<8xf32> to vector<8x1xf32>
    %18 = vector.broadcast %17 : vector<8x1xf32> to vector<8x8xf32>
    %19 = arith.subf %15, %18 : vector<8x8xf32>
    %20 = math.exp %19 : vector<8x8xf32>
    %cst_13 = arith.constant dense<0.000000e+00> : vector<8xf32>
    %21 = vector.multi_reduction <add>, %20, %cst_13 [1] : vector<8x8xf32> to vector<8xf32>
    %22 = vector.shape_cast %21 : vector<8xf32> to vector<8x1xf32>
    %23 = tpu.reciprocal %22 : vector<8x1xf32> -> vector<8x1xf32>
    %24 = vector.broadcast %23 : vector<8x1xf32> to vector<8x8xf32>
    %25 = arith.mulf %20, %24 : vector<8x8xf32>
    %26 = arith.truncf %25 : vector<8x8xf32> to vector<8x8xbf16>
    %cst_14 = arith.constant dense<0.000000e+00> : vector<8x8xf32>
    %27 = tpu.matmul %26, %13, %cst_14 {dimension_numbers = #tpu.dot_dimension_numbers<[1], [0], [0], [1], [0, 0, 1, 1], [], []>} : vector<8x8xbf16>, vector<8x8xbf16>, vector<8x8xf32> -> vector<8x8xf32>
    %28 = arith.truncf %27 : vector<8x8xf32> to vector<8x8xbf16>
    %c0_15 = arith.constant 0 : index
    %c0_16 = arith.constant 0 : index
    %29 = vector.load %arg14[%c0_15, %c0_16] : memref<8x32xbf16, #tpu.memory_space<vmem>>, vector<8x8xbf16>
    tpu.vector_store %arg14[%c0_15, %c0_16], %28 {strides = array<i32>} : memref<8x32xbf16, #tpu.memory_space<vmem>>, vector<8x8xbf16>,
    %c0_17 = arith.constant 0 : index
    %c8 = arith.constant 8 : index
    %30 = vector.load %arg12[%c0_17, %c8] : memref<8x32xbf16, #tpu.memory_space<vmem>>, vector<8x8xbf16>
    %c0_18 = arith.constant 0 : index
    %c8_19 = arith.constant 8 : index
    %31 = vector.load %arg13[%c0_18, %c8_19] : memref<8x32xbf16, #tpu.memory_space<vmem>>, vector<8x8xbf16>
    %32 = vector.extract_strided_slice %11 {offsets = [0, 8], sizes = [8, 8], strides = [1, 1]} : vector<8x32xbf16> to vector<8x8xbf16>
    %cst_20 = arith.constant dense<0.000000e+00> : vector<8x8xf32>
    %33 = tpu.matmul %32, %30, %cst_20 {dimension_numbers = #tpu.dot_dimension_numbers<[1], [1], [0], [0], [0, 0, 1, 0], [], []>} : vector<8x8xbf16>, vector<8x8xbf16>, vector<8x8xf32> -> vector<8x8xf32>
    %cst_21 = arith.constant dense<0xFF800000> : vector<8xf32>
    %34 = vector.multi_reduction <maximumf>, %33, %cst_21 [1] : vector<8x8xf32> to vector<8xf32>
    %35 = vector.shape_cast %34 : vector<8xf32> to vector<8x1xf32>
    %36 = vector.broadcast %35 : vector<8x1xf32> to vector<8x8xf32>
    %37 = arith.subf %33, %36 : vector<8x8xf32>
    %38 = math.exp %37 : vector<8x8xf32>
    %cst_22 = arith.constant dense<0.000000e+00> : vector<8xf32>
    %39 = vector.multi_reduction <add>, %38, %cst_22 [1] : vector<8x8xf32> to vector<8xf32>
    %40 = vector.shape_cast %39 : vector<8xf32> to vector<8x1xf32>
    %41 = tpu.reciprocal %40 : vector<8x1xf32> -> vector<8x1xf32>
    %42 = vector.broadcast %41 : vector<8x1xf32> to vector<8x8xf32>
    %43 = arith.mulf %38, %42 : vector<8x8xf32>
    %44 = arith.truncf %43 : vector<8x8xf32> to vector<8x8xbf16>
    %cst_23 = arith.constant dense<0.000000e+00> : vector<8x8xf32>
    %45 = tpu.matmul %44, %31, %cst_23 {dimension_numbers = #tpu.dot_dimension_numbers<[1], [0], [0], [1], [0, 0, 1, 1], [], []>} : vector<8x8xbf16>, vector<8x8xbf16>, vector<8x8xf32> -> vector<8x8xf32>
    %46 = arith.truncf %45 : vector<8x8xf32> to vector<8x8xbf16>
    %c0_24 = arith.constant 0 : index
    %c8_25 = arith.constant 8 : index
    %47 = vector.load %arg14[%c0_24, %c8_25] : memref<8x32xbf16, #tpu.memory_space<vmem>>, vector<8x8xbf16>
    tpu.vector_store %arg14[%c0_24, %c8_25], %46 {strides = array<i32>} : memref<8x32xbf16, #tpu.memory_space<vmem>>, vector<8x8xbf16>,
    %c0_26 = arith.constant 0 : index
    %c16 = arith.constant 16 : index
    %48 = vector.load %arg12[%c0_26, %c16] : memref<8x32xbf16, #tpu.memory_space<vmem>>, vector<8x8xbf16>
    %c0_27 = arith.constant 0 : index
    %c16_28 = arith.constant 16 : index
    %49 = vector.load %arg13[%c0_27, %c16_28] : memref<8x32xbf16, #tpu.memory_space<vmem>>, vector<8x8xbf16>
    %50 = vector.extract_strided_slice %11 {offsets = [0, 16], sizes = [8, 8], strides = [1, 1]} : vector<8x32xbf16> to vector<8x8xbf16>
    %cst_29 = arith.constant dense<0.000000e+00> : vector<8x8xf32>
    %51 = tpu.matmul %50, %48, %cst_29 {dimension_numbers = #tpu.dot_dimension_numbers<[1], [1], [0], [0], [0, 0, 1, 0], [], []>} : vector<8x8xbf16>, vector<8x8xbf16>, vector<8x8xf32> -> vector<8x8xf32>
    %cst_30 = arith.constant dense<0xFF800000> : vector<8xf32>
    %52 = vector.multi_reduction <maximumf>, %51, %cst_30 [1] : vector<8x8xf32> to vector<8xf32>
    %53 = vector.shape_cast %52 : vector<8xf32> to vector<8x1xf32>
    %54 = vector.broadcast %53 : vector<8x1xf32> to vector<8x8xf32>
    %55 = arith.subf %51, %54 : vector<8x8xf32>
    %56 = math.exp %55 : vector<8x8xf32>
    %cst_31 = arith.constant dense<0.000000e+00> : vector<8xf32>
    %57 = vector.multi_reduction <add>, %56, %cst_31 [1] : vector<8x8xf32> to vector<8xf32>
    %58 = vector.shape_cast %57 : vector<8xf32> to vector<8x1xf32>
    %59 = tpu.reciprocal %58 : vector<8x1xf32> -> vector<8x1xf32>
    %60 = vector.broadcast %59 : vector<8x1xf32> to vector<8x8xf32>
    %61 = arith.mulf %56, %60 : vector<8x8xf32>
    %62 = arith.truncf %61 : vector<8x8xf32> to vector<8x8xbf16>
    %cst_32 = arith.constant dense<0.000000e+00> : vector<8x8xf32>
    %63 = tpu.matmul %62, %49, %cst_32 {dimension_numbers = #tpu.dot_dimension_numbers<[1], [0], [0], [1], [0, 0, 1, 1], [], []>} : vector<8x8xbf16>, vector<8x8xbf16>, vector<8x8xf32> -> vector<8x8xf32>
    %64 = arith.truncf %63 : vector<8x8xf32> to vector<8x8xbf16>
    %c0_33 = arith.constant 0 : index
    %c16_34 = arith.constant 16 : index
    %65 = vector.load %arg14[%c0_33, %c16_34] : memref<8x32xbf16, #tpu.memory_space<vmem>>, vector<8x8xbf16>
    tpu.vector_store %arg14[%c0_33, %c16_34], %64 {strides = array<i32>} : memref<8x32xbf16, #tpu.memory_space<vmem>>, vector<8x8xbf16>,
    %c0_35 = arith.constant 0 : index
    %c24 = arith.constant 24 : index
    %66 = vector.load %arg12[%c0_35, %c24] : memref<8x32xbf16, #tpu.memory_space<vmem>>, vector<8x8xbf16>
    %c0_36 = arith.constant 0 : index
    %c24_37 = arith.constant 24 : index
    %67 = vector.load %arg13[%c0_36, %c24_37] : memref<8x32xbf16, #tpu.memory_space<vmem>>, vector<8x8xbf16>
    %68 = vector.extract_strided_slice %11 {offsets = [0, 24], sizes = [8, 8], strides = [1, 1]} : vector<8x32xbf16> to vector<8x8xbf16>
    %cst_38 = arith.constant dense<0.000000e+00> : vector<8x8xf32>
    %69 = tpu.matmul %68, %66, %cst_38 {dimension_numbers = #tpu.dot_dimension_numbers<[1], [1], [0], [0], [0, 0, 1, 0], [], []>} : vector<8x8xbf16>, vector<8x8xbf16>, vector<8x8xf32> -> vector<8x8xf32>
    %cst_39 = arith.constant dense<0xFF800000> : vector<8xf32>
    %70 = vector.multi_reduction <maximumf>, %69, %cst_39 [1] : vector<8x8xf32> to vector<8xf32>
    %71 = vector.shape_cast %70 : vector<8xf32> to vector<8x1xf32>
    %72 = vector.broadcast %71 : vector<8x1xf32> to vector<8x8xf32>
    %73 = arith.subf %69, %72 : vector<8x8xf32>
    %74 = math.exp %73 : vector<8x8xf32>
    %cst_40 = arith.constant dense<0.000000e+00> : vector<8xf32>
    %75 = vector.multi_reduction <add>, %74, %cst_40 [1] : vector<8x8xf32> to vector<8xf32>
    %76 = vector.shape_cast %75 : vector<8xf32> to vector<8x1xf32>
    %77 = tpu.reciprocal %76 : vector<8x1xf32> -> vector<8x1xf32>
    %78 = vector.broadcast %77 : vector<8x1xf32> to vector<8x8xf32>
    %79 = arith.mulf %74, %78 : vector<8x8xf32>
    %80 = arith.truncf %79 : vector<8x8xf32> to vector<8x8xbf16>
    %cst_41 = arith.constant dense<0.000000e+00> : vector<8x8xf32>
    %81 = tpu.matmul %80, %67, %cst_41 {dimension_numbers = #tpu.dot_dimension_numbers<[1], [0], [0], [1], [0, 0, 1, 1], [], []>} : vector<8x8xbf16>, vector<8x8xbf16>, vector<8x8xf32> -> vector<8x8xf32>
    %82 = arith.truncf %81 : vector<8x8xf32> to vector<8x8xbf16>
    %c0_42 = arith.constant 0 : index
    %c24_43 = arith.constant 24 : index
    %83 = vector.load %arg14[%c0_42, %c24_43] : memref<8x32xbf16, #tpu.memory_space<vmem>>, vector<8x8xbf16>
    tpu.vector_store %arg14[%c0_42, %c24_43], %82 {strides = array<i32>} : memref<8x32xbf16, #tpu.memory_space<vmem>>, vector<8x8xbf16>,
    %c0_44 = arith.constant 0 : index
    %c0_45 = arith.constant 0 : index
    %84 = vector.load %arg14[%c0_44, %c0_45] : memref<8x32xbf16, #tpu.memory_space<vmem>>, vector<8x32xbf16>
    %c0_46 = arith.constant 0 : index
    %c0_47 = arith.constant 0 : index
    %85 = vector.load %arg8[%c0_46, %c0_47] : memref<32x32xbf16, #tpu.memory_space<vmem>>, vector<32x32xbf16>
    %cst_48 = arith.constant dense<0.000000e+00> : vector<8x32xf32>
    %86 = tpu.matmul %84, %85, %cst_48 {dimension_numbers = #tpu.dot_dimension_numbers<[1], [0], [0], [1], [0, 0, 1, 1], [], []>} : vector<8x32xbf16>, vector<32x32xbf16>, vector<8x32xf32> -> vector<8x32xf32>
    %c0_49 = arith.constant 0 : index
    %c0_50 = arith.constant 0 : index
    %87 = vector.load %arg10[%c0_49, %c0_50] : memref<1x32xf32, #tpu.memory_space<vmem>>, vector<1x32xf32>
    %88 = vector.broadcast %87 : vector<1x32xf32> to vector<8x32xf32>
    %89 = arith.addf %86, %88 : vector<8x32xf32>
    %c0_51 = arith.constant 0 : index
    %c0_52 = arith.constant 0 : index
    %c0_53 = arith.constant 0 : index
    %90 = vector.load %arg11[%c0_51, %c0_52, %c0_53] : memref<1x8x32xf32, #tpu.memory_space<vmem>>, vector<1x8x32xf32>
    %91 = vector.shape_cast %90 : vector<1x8x32xf32> to vector<8x32xf32>
    %92 = vector.shape_cast %89 : vector<8x32xf32> to vector<1x8x32xf32>
    tpu.vector_store %arg11[%c0_51, %c0_52, %c0_53], %92 {strides = array<i32>} : memref<1x8x32xf32, #tpu.memory_space<vmem>>, vector<1x8x32xf32>,
    return
  }
  func.func @transform_0(%arg0: i32, %arg1: i32) -> (i32, i32, i32) {
    %c0_i32 = arith.constant 0 : i32
    %c0_i32_0 = arith.constant 0 : i32
    return %arg0, %arg1, %c0_i32 : i32, i32, i32
  }
  func.func @transform_1(%arg0: i32, %arg1: i32) -> (i32, i32, i32) {
    %c0_i32 = arith.constant 0 : i32
    %c0_i32_0 = arith.constant 0 : i32
    %c0_i32_1 = arith.constant 0 : i32
    return %arg0, %c0_i32, %c0_i32_0 : i32, i32, i32
  }
  func.func @transform_2(%arg0: i32, %arg1: i32) -> (i32, i32, i32) {
    %c0_i32 = arith.constant 0 : i32
    %c0_i32_0 = arith.constant 0 : i32
    %c0_i32_1 = arith.constant 0 : i32
    return %arg0, %c0_i32, %c0_i32_0 : i32, i32, i32
  }
  func.func @transform_3(%arg0: i32, %arg1: i32) -> (i32, i32) {
    %c0_i32 = arith.constant 0 : i32
    %c0_i32_0 = arith.constant 0 : i32
    %c0_i32_1 = arith.constant 0 : i32
    return %c0_i32, %c0_i32_0 : i32, i32
  }
  func.func @transform_4(%arg0: i32, %arg1: i32) -> (i32, i32) {
    %c0_i32 = arith.constant 0 : i32
    %c0_i32_0 = arith.constant 0 : i32
    %c0_i32_1 = arith.constant 0 : i32
    return %c0_i32, %c0_i32_0 : i32, i32
  }
  func.func @transform_5(%arg0: i32, %arg1: i32) -> (i32, i32) {
    %c0_i32 = arith.constant 0 : i32
    %c0_i32_0 = arith.constant 0 : i32
    %c0_i32_1 = arith.constant 0 : i32
    return %c0_i32, %c0_i32_0 : i32, i32
  }
  func.func @transform_6(%arg0: i32, %arg1: i32) -> (i32, i32) {
    %c0_i32 = arith.constant 0 : i32
    %c0_i32_0 = arith.constant 0 : i32
    %c0_i32_1 = arith.constant 0 : i32
    return %c0_i32, %c0_i32_0 : i32, i32
  }
  func.func @transform_7(%arg0: i32, %arg1: i32) -> (i32, i32) {
    %c0_i32 = arith.constant 0 : i32
    %c0_i32_0 = arith.constant 0 : i32
    %c0_i32_1 = arith.constant 0 : i32
    return %c0_i32, %c0_i32_0 : i32, i32
  }
  func.func @transform_8(%arg0: i32, %arg1: i32) -> (i32, i32) {
    %c0_i32 = arith.constant 0 : i32
    %c0_i32_0 = arith.constant 0 : i32
    %c0_i32_1 = arith.constant 0 : i32
    return %c0_i32, %c0_i32_0 : i32, i32
  }
  func.func @transform_9(%arg0: i32, %arg1: i32) -> (i32, i32, i32) {
    %c0_i32 = arith.constant 0 : i32
    %c0_i32_0 = arith.constant 0 : i32
    return %arg0, %arg1, %c0_i32 : i32, i32, i32
  }
}

</mosaic_0001>

<llo_original>
// kernel: tpu_custom_call.1
$region0: #{tpu_custom_call.1}
  #allocation0 [shape = 'u32[]', space=smem, size = 0x4, offset = 0x4, fixed_abs, tag = 'smem constant byte address 0x4 - core index']
  #allocation1 [shape = 'u32[72,128]{1,0:T(1,128)}', space=vmem, size = 0x9000, scoped, tag = 'internal scratch']
  #allocation2 [shape = 'bf16[8,32]{1,0:T(8,128)(2,1)}', space=vmem, size = 0x800, scoped, tag = 'scratch operand']
  #allocation3 [shape = 'bf16[8,32]{1,0:T(8,128)(2,1)}', space=vmem, size = 0x800, scoped, tag = 'scratch operand']
  #allocation4 [shape = 'bf16[8,32]{1,0:T(8,128)(2,1)}', space=vmem, size = 0x800, scoped, tag = 'scratch operand']
  %s0 = inlined_call_operand.hbm [shape: f32[2,8,32], index: 0, kind: input, shape index: {}]
  %s1 = inlined_call_operand.hbm [shape: f32[2,8,32], index: 1, kind: input, shape index: {}]
  %s2 = inlined_call_operand.hbm [shape: f32[2,8,32], index: 2, kind: input, shape index: {}]
  %s3 = inlined_call_operand.hbm [shape: bf16[32,32], index: 3, kind: input, shape index: {}]
  %s4 = inlined_call_operand.hbm [shape: bf16[32,32], index: 4, kind: input, shape index: {}]
  %s5 = inlined_call_operand.hbm [shape: bf16[32,32], index: 5, kind: input, shape index: {}]
  %s6 = inlined_call_operand.hbm [shape: bf16[32,32], index: 6, kind: input, shape index: {}]
  %s7 = inlined_call_operand.vmem [shape: f32[3,32], index: 7, kind: input, shape index: {}]
  %s8 = inlined_call_operand.vmem [shape: f32[1,32], index: 8, kind: input, shape index: {}]
  %s9 = inlined_call_operand.hbm [shape: f32[2,8,32], index: 9, kind: output, shape index: {}]
  %s10 = sld [smem:[#allocation0]]
  $region101: #{tpu_custom_call.1} parent=0
    _
  %s12 = ssub.s32 1, %s10
  %s13 = scalar_select 0, %s12, %s10
  $region1: #{tpu_custom_call.1} parent=0
    #allocation5 [shape = 'u8[8192]{0}', space=vmem, size = 0x2000, scoped, tag = 'input window, operand 0']
    #allocation6 [shape = 's32[2]{0}', space=sflag, size = 0x8, scoped, tag = 'scoped memory for tpu_custom_call.1']
    #allocation7 [shape = 's32[2]{0}', space=sflag, size = 0x8, scoped, tag = 'scoped memory for tpu_custom_call.1']
    #allocation8 [shape = 'u8[8192]{0}', space=vmem, size = 0x2000, scoped, tag = 'input window, operand 1']
    #allocation9 [shape = 's32[2]{0}', space=sflag, size = 0x8, scoped, tag = 'scoped memory for tpu_custom_call.1']
    #allocation10 [shape = 'u8[8192]{0}', space=vmem, size = 0x2000, scoped, tag = 'input window, operand 2']
    #allocation11 [shape = 'u8[8192]{0}', space=vmem, size = 0x2000, scoped, tag = 'input window, operand 3, single buffered']
    #allocation12 [shape = 's32[1]{0}', space=sflag, size = 0x4, scoped, tag = 'scoped memory for tpu_custom_call.1']
    #allocation13 [shape = 'u8[8192]{0}', space=vmem, size = 0x2000, scoped, tag = 'input window, operand 4, single buffered']
    #allocation14 [shape = 'u8[8192]{0}', space=vmem, size = 0x2000, scoped, tag = 'input window, operand 5, single buffered']
    #allocation15 [shape = 's32[1]{0}', space=sflag, size = 0x4, scoped, tag = 'scoped memory for tpu_custom_call.1']
    #allocation16 [shape = 'u8[8192]{0}', space=vmem, size = 0x2000, scoped, tag = 'input window, operand 6, single buffered']
    #allocation17 [shape = 'u8[8192]{0}', space=vmem, size = 0x2000, scoped, tag = 'output window, operand 0']
    %14 = vsyncpa [#allocation6], 0
    %s15 = scalar_lea.sflag [#allocation6], 1
    %16 = vsyncpa %s15, 0
    %17 = vsyncpa [#allocation9], 0
    %s18 = scalar_lea.sflag [#allocation9], 1
    %19 = vsyncpa %s18, 0
    %20 = vsyncpa [#allocation12], 0
    %21 = vsyncpa [#allocation15], 0
    %22 = vsyncpa [#allocation7], 0
    %s23 = scalar_lea.sflag [#allocation7], 1
    %24 = vsyncpa %s23, 0
    loop: start=0, step=1, limit=4
    $region2: #{tpu_custom_call.1} parent=1 // loop_pre_header
      _
    $region3: #{tpu_custom_call.1} parent=1 // loop_header
      %s26 = sphi 0, %s30
      %p27 = scmp.ge.s32.totalorder %s26, 4
      %s33 = sphi 0, %s45
      %s34 = sphi 0, %s41
      %s35 = sphi 0, %s33
      %s36 = sphi 0, %s34
      %s37 = sphi 0, %s35
      %s38 = sphi 0, %s36
      %s50 = sphi 0, %s52
      %s53 = sphi 0, %s50
      %s54 = sphi 0, %s53
      %s70 = sphi 0, %s54
      %s76 = sphi 0, %s78
      %s79 = sphi 0, %s76
      %s80 = sphi 0, %s79
      %s96 = sphi 0, %s80
      %s102 = sphi 0, %s104
      %s105 = sphi 0, %s102
      %s106 = sphi 0, %s105
      %s122 = sphi 0, %s106
      %s126 = sphi 0, %s126
      %s128 = sphi 0, %s126
      %s129 = sphi 0, %s128
      %s143 = sphi 0, %s129
      %s147 = sphi 0, %s147
      %s149 = sphi 0, %s147
      %s150 = sphi 0, %s149
      %s164 = sphi 0, %s150
      %s168 = sphi 0, %s168
      %s170 = sphi 0, %s168
      %s171 = sphi 0, %s170
      %s185 = sphi 0, %s171
      %s189 = sphi 0, %s189
      %s191 = sphi 0, %s189
      %s192 = sphi 0, %s191
      %s206 = sphi 0, %s192
      %s210 = sphi 0, %s210
      %s212 = sphi 0, %s210
      %s213 = sphi 0, %s212
      %s227 = sphi 0, %s213
      %s231 = sphi 0, %s231
      %s233 = sphi 0, %s231
      %s234 = sphi 0, %s233
      %s248 = sphi 0, %s234
      %s256 = sphi 0, %s258
      %s259 = sphi 0, %s256
      %s260 = sphi 0, %s259
      %s276 = sphi 0, %s260
    $region4: #{tpu_custom_call.1} parent=1 // loop_header_branch
      %29 = sbr.rel (%p27) target = $region8
    $region5: #{tpu_custom_call.1} parent=1 // loop_body
      %s31 = ssub.s32 %s26, 1
      %s32 = ssub.s32 %s26, 2
      %s39 = sadd.s32 1, %s34
      %p40 = scmp.ge.s32.totalorder %s39, 1
      %s41 = scalar_select %p40, 0, %s39
      %s42 = sadd.s32 1, %s33
      %s43 = scalar_select %p40, %s42, %s33
      %p44 = scmp.ge.s32.totalorder %s43, 2
      %s45 = scalar_select %p44, 0, %s43
      %s46 = ssub.s32 %s33, %s45
      %s47 = ssub.s32 %s34, %s41
      %s48 = sor.u32 %s46, %s47
      %p49 = scmp.eq.s32.totalorder %s48, 0
      %s51 = sadd.s32 %s50, 1
      %s52 = scalar_select %p49, %s50, %s51
      %p55 = pneg %p49
      %p56 = scmp.eq.s32.totalorder %s26, 1
      %p57 = por %p55, %p56
      %p58 = scmp.ne.s32.totalorder %s50, %s53
      %p59 = scmp.eq.s32.totalorder %s26, 0
      %p60 = por %p58, %p59
      %p61 = scmp.ne.s32.totalorder %s50, %s53
      %p62 = scmp.eq.s32.totalorder %s31, 1
      %p63 = por %p61, %p62
      %p64 = scmp.ne.s32.totalorder %s53, %s54
      %p65 = scmp.eq.s32.totalorder %s31, 0
      %p66 = por %p64, %p65
      %p67 = scmp.ne.s32.totalorder %s53, %s54
      %p68 = scmp.eq.s32.totalorder %s32, 1
      %p69 = por %p67, %p68
      %p71 = scmp.ne.s32.totalorder %s54, %s70
      %p72 = scmp.eq.s32.totalorder %s32, 0
      %p73 = por %p71, %p72
      %s74 = ssub.s32 %s33, %s45
      %p75 = scmp.eq.s32.totalorder %s74, 0
      %s77 = sadd.s32 %s76, 1
      %s78 = scalar_select %p75, %s76, %s77
      %p81 = pneg %p75
      %p82 = scmp.eq.s32.totalorder %s26, 1
      %p83 = por %p81, %p82
      %p84 = scmp.ne.s32.totalorder %s76, %s79
      %p85 = scmp.eq.s32.totalorder %s26, 0
      %p86 = por %p84, %p85
      %p87 = scmp.ne.s32.totalorder %s76, %s79
      %p88 = scmp.eq.s32.totalorder %s31, 1
      %p89 = por %p87, %p88
      %p90 = scmp.ne.s32.totalorder %s79, %s80
      %p91 = scmp.eq.s32.totalorder %s31, 0
      %p92 = por %p90, %p91
      %p93 = scmp.ne.s32.totalorder %s79, %s80
      %p94 = scmp.eq.s32.totalorder %s32, 1
      %p95 = por %p93, %p94
      %p97 = scmp.ne.s32.totalorder %s80, %s96
      %p98 = scmp.eq.s32.totalorder %s32, 0
      %p99 = por %p97, %p98
      %s100 = ssub.s32 %s33, %s45
      %p101 = scmp.eq.s32.totalorder %s100, 0
      %s103 = sadd.s32 %s102, 1
      %s104 = scalar_select %p101, %s102, %s103
      %p107 = pneg %p101
      %p108 = scmp.eq.s32.totalorder %s26, 1
      %p109 = por %p107, %p108
      %p110 = scmp.ne.s32.totalorder %s102, %s105
      %p111 = scmp.eq.s32.totalorder %s26, 0
      %p112 = por %p110, %p111
      %p113 = scmp.ne.s32.totalorder %s102, %s105
      %p114 = scmp.eq.s32.totalorder %s31, 1
      %p115 = por %p113, %p114
      %p116 = scmp.ne.s32.totalorder %s105, %s106
      %p117 = scmp.eq.s32.totalorder %s31, 0
      %p118 = por %p116, %p117
      %p119 = scmp.ne.s32.totalorder %s105, %s106
      %p120 = scmp.eq.s32.totalorder %s32, 1
      %p121 = por %p119, %p120
      %p123 = scmp.ne.s32.totalorder %s106, %s122
      %p124 = scmp.eq.s32.totalorder %s32, 0
      %p125 = por %p123, %p124
      %s127 = sadd.s32 %s126, 1
      %p130 = scmp.eq.s32.totalorder %s26, 1
      %p131 = scmp.ne.s32.totalorder %s126, %s128
      %p132 = scmp.eq.s32.totalorder %s26, 0
      %p133 = por %p131, %p132
      %p134 = scmp.ne.s32.totalorder %s126, %s128
      %p135 = scmp.eq.s32.totalorder %s31, 1
      %p136 = por %p134, %p135
      %p137 = scmp.ne.s32.totalorder %s128, %s129
      %p138 = scmp.eq.s32.totalorder %s31, 0
      %p139 = por %p137, %p138
      %p140 = scmp.ne.s32.totalorder %s128, %s129
      %p141 = scmp.eq.s32.totalorder %s32, 1
      %p142 = por %p140, %p141
      %p144 = scmp.ne.s32.totalorder %s129, %s143
      %p145 = scmp.eq.s32.totalorder %s32, 0
      %p146 = por %p144, %p145
      %s148 = sadd.s32 %s147, 1
      %p151 = scmp.eq.s32.totalorder %s26, 1
      %p152 = scmp.ne.s32.totalorder %s147, %s149
      %p153 = scmp.eq.s32.totalorder %s26, 0
      %p154 = por %p152, %p153
      %p155 = scmp.ne.s32.totalorder %s147, %s149
      %p156 = scmp.eq.s32.totalorder %s31, 1
      %p157 = por %p155, %p156
      %p158 = scmp.ne.s32.totalorder %s149, %s150
      %p159 = scmp.eq.s32.totalorder %s31, 0
      %p160 = por %p158, %p159
      %p161 = scmp.ne.s32.totalorder %s149, %s150
      %p162 = scmp.eq.s32.totalorder %s32, 1
      %p163 = por %p161, %p162
      %p165 = scmp.ne.s32.totalorder %s150, %s164
      %p166 = scmp.eq.s32.totalorder %s32, 0
      %p167 = por %p165, %p166
      %s169 = sadd.s32 %s168, 1
      %p172 = scmp.eq.s32.totalorder %s26, 1
      %p173 = scmp.ne.s32.totalorder %s168, %s170
      %p174 = scmp.eq.s32.totalorder %s26, 0
      %p175 = por %p173, %p174
      %p176 = scmp.ne.s32.totalorder %s168, %s170
      %p177 = scmp.eq.s32.totalorder %s31, 1
      %p178 = por %p176, %p177
      %p179 = scmp.ne.s32.totalorder %s170, %s171
      %p180 = scmp.eq.s32.totalorder %s31, 0
      %p181 = por %p179, %p180
      %p182 = scmp.ne.s32.totalorder %s170, %s171
      %p183 = scmp.eq.s32.totalorder %s32, 1
      %p184 = por %p182, %p183
      %p186 = scmp.ne.s32.totalorder %s171, %s185
      %p187 = scmp.eq.s32.totalorder %s32, 0
      %p188 = por %p186, %p187
      %s190 = sadd.s32 %s189, 1
      %p193 = scmp.eq.s32.totalorder %s26, 1
      %p194 = scmp.ne.s32.totalorder %s189, %s191
      %p195 = scmp.eq.s32.totalorder %s26, 0
      %p196 = por %p194, %p195
      %p197 = scmp.ne.s32.totalorder %s189, %s191
      %p198 = scmp.eq.s32.totalorder %s31, 1
      %p199 = por %p197, %p198
      %p200 = scmp.ne.s32.totalorder %s191, %s192
      %p201 = scmp.eq.s32.totalorder %s31, 0
      %p202 = por %p200, %p201
      %p203 = scmp.ne.s32.totalorder %s191, %s192
      %p204 = scmp.eq.s32.totalorder %s32, 1
      %p205 = por %p203, %p204
      %p207 = scmp.ne.s32.totalorder %s192, %s206
      %p208 = scmp.eq.s32.totalorder %s32, 0
      %p209 = por %p207, %p208
      %s211 = sadd.s32 %s210, 1
      %p214 = scmp.eq.s32.totalorder %s26, 1
      %p215 = scmp.ne.s32.totalorder %s210, %s212
      %p216 = scmp.eq.s32.totalorder %s26, 0
      %p217 = por %p215, %p216
      %p218 = scmp.ne.s32.totalorder %s210, %s212
      %p219 = scmp.eq.s32.totalorder %s31, 1
      %p220 = por %p218, %p219
      %p221 = scmp.ne.s32.totalorder %s212, %s213
      %p222 = scmp.eq.s32.totalorder %s31, 0
      %p223 = por %p221, %p222
      %p224 = scmp.ne.s32.totalorder %s212, %s213
      %p225 = scmp.eq.s32.totalorder %s32, 1
      %p226 = por %p224, %p225
      %p228 = scmp.ne.s32.totalorder %s213, %s227
      %p229 = scmp.eq.s32.totalorder %s32, 0
      %p230 = por %p228, %p229
      %s232 = sadd.s32 %s231, 1
      %p235 = scmp.eq.s32.totalorder %s26, 1
      %p236 = scmp.ne.s32.totalorder %s231, %s233
      %p237 = scmp.eq.s32.totalorder %s26, 0
      %p238 = por %p236, %p237
      %p239 = scmp.ne.s32.totalorder %s231, %s233
      %p240 = scmp.eq.s32.totalorder %s31, 1
      %p241 = por %p239, %p240
      %p242 = scmp.ne.s32.totalorder %s233, %s234
      %p243 = scmp.eq.s32.totalorder %s31, 0
      %p244 = por %p242, %p243
      %p245 = scmp.ne.s32.totalorder %s233, %s234
      %p246 = scmp.eq.s32.totalorder %s32, 1
      %p247 = por %p245, %p246
      %p249 = scmp.ne.s32.totalorder %s234, %s248
      %p250 = scmp.eq.s32.totalorder %s32, 0
      %p251 = por %p249, %p250
      %s252 = ssub.s32 %s33, %s45
      %s253 = ssub.s32 %s34, %s41
      %s254 = sor.u32 %s252, %s253
      %p255 = scmp.eq.s32.totalorder %s254, 0
      %s257 = sadd.s32 %s256, 1
      %s258 = scalar_select %p255, %s256, %s257
      %p261 = pneg %p255
      %p262 = scmp.eq.s32.totalorder %s26, 1
      %p263 = por %p261, %p262
      %p264 = scmp.ne.s32.totalorder %s256, %s259
      %p265 = scmp.eq.s32.totalorder %s26, 0
      %p266 = por %p264, %p265
      %p267 = scmp.ne.s32.totalorder %s256, %s259
      %p268 = scmp.eq.s32.totalorder %s31, 1
      %p269 = por %p267, %p268
      %p270 = scmp.ne.s32.totalorder %s259, %s260
      %p271 = scmp.eq.s32.totalorder %s31, 0
      %p272 = por %p270, %p271
      %p273 = scmp.ne.s32.totalorder %s259, %s260
      %p274 = scmp.eq.s32.totalorder %s32, 1
      %p275 = por %p273, %p274
      %p277 = scmp.ne.s32.totalorder %s260, %s276
      %p278 = scmp.eq.s32.totalorder %s32, 0
      %p279 = por %p277, %p278
      %p280 = scmp.le.s32.totalorder 1, %s26
      %p281 = scmp.lt.s32.totalorder %s26, 3
      %p282 = pnand %p280, %p281
      %p283 = pneg %p282
      // Predicated region
      $region9: #{tpu_custom_call.1} parent=5 // pred_check
        _
      $region10: #{tpu_custom_call.1} parent=5 // pred_check_branch
        %285 = sbr.rel (%p282) target = $region12
      $region11: #{tpu_custom_call.1} parent=5 // pred_region
        %s286 = ssub.s32 %s26, 1
        // Predicated region
        $region13: #{tpu_custom_call.1} parent=11 // pred_check
          %p287 = pneg %p139
        $region14: #{tpu_custom_call.1} parent=11 // pred_check_branch
          %289 = sbr.rel (%p287) target = $region16
        $region15: #{tpu_custom_call.1} parent=11 // pred_region
          %291 = vsyncadd [#allocation12], 0
          %s292 = sshll.u32 %s3, 4
          %s293 = int_to_ptr.hbm [resolvable:$true] %s292
          %s294 = sshll.u32 [#allocation11], 4
          %s295 = int_to_ptr.vmem [resolvable:$true] %s294
          %300 = dma.hbm_to_vmem [thread:$0]  %s293, 256, %s295, [#allocation12], 64, 64, 4
        $region16: #{tpu_custom_call.1} parent=11 // pred_fallthru
          _
        // Predicated region
        $region17: #{tpu_custom_call.1} parent=11 // pred_check
          %p301 = pneg %p160
        $region18: #{tpu_custom_call.1} parent=11 // pred_check_branch
          %303 = sbr.rel (%p301) target = $region20
        $region19: #{tpu_custom_call.1} parent=11 // pred_region
          %305 = vsyncadd [#allocation12], 0
          %s306 = sshll.u32 %s4, 4
          %s307 = int_to_ptr.hbm [resolvable:$true] %s306
          %s308 = sshll.u32 [#allocation13], 4
          %s309 = int_to_ptr.vmem [resolvable:$true] %s308
          %314 = dma.hbm_to_vmem [thread:$0]  %s307, 256, %s309, [#allocation12], 64, 64, 4
        $region20: #{tpu_custom_call.1} parent=11 // pred_fallthru
          _
        // Predicated region
        $region21: #{tpu_custom_call.1} parent=11 // pred_check
          %p315 = pneg %p181
        $region22: #{tpu_custom_call.1} parent=11 // pred_check_branch
          %317 = sbr.rel (%p315) target = $region24
        $region23: #{tpu_custom_call.1} parent=11 // pred_region
          %319 = vsyncadd [#allocation15], 0
          %s320 = sshll.u32 %s5, 4
          %s321 = int_to_ptr.hbm [resolvable:$true] %s320
          %s322 = sshll.u32 [#allocation14], 4
          %s323 = int_to_ptr.vmem [resolvable:$true] %s322
          %328 = dma.hbm_to_vmem [thread:$0]  %s321, 256, %s323, [#allocation15], 64, 64, 4
        $region24: #{tpu_custom_call.1} parent=11 // pred_fallthru
          _
        // Predicated region
        $region25: #{tpu_custom_call.1} parent=11 // pred_check
          %p329 = pneg %p202
        $region26: #{tpu_custom_call.1} parent=11 // pred_check_branch
          %331 = sbr.rel (%p329) target = $region28
        $region27: #{tpu_custom_call.1} parent=11 // pred_region
          %333 = vsyncadd [#allocation15], 0
          %s334 = sshll.u32 %s6, 4
          %s335 = int_to_ptr.hbm [resolvable:$true] %s334
          %s336 = sshll.u32 [#allocation16], 4
          %s337 = int_to_ptr.vmem [resolvable:$true] %s336
          %342 = dma.hbm_to_vmem [thread:$0]  %s335, 256, %s337, [#allocation15], 64, 64, 4
        $region28: #{tpu_custom_call.1} parent=11 // pred_fallthru
          _
        // Predicated region
        $region29: #{tpu_custom_call.1} parent=11 // pred_check
          %p343 = pneg %p223
        $region30: #{tpu_custom_call.1} parent=11 // pred_check_branch
          %345 = sbr.rel (%p343) target = $region32
        $region31: #{tpu_custom_call.1} parent=11 // pred_region
          _
        $region32: #{tpu_custom_call.1} parent=11 // pred_fallthru
          _
        // Predicated region
        $region33: #{tpu_custom_call.1} parent=11 // pred_check
          %p346 = pneg %p244
        $region34: #{tpu_custom_call.1} parent=11 // pred_check_branch
          %348 = sbr.rel (%p346) target = $region36
        $region35: #{tpu_custom_call.1} parent=11 // pred_region
          _
        $region36: #{tpu_custom_call.1} parent=11 // pred_fallthru
          _
      $region12: #{tpu_custom_call.1} parent=5 // pred_fallthru
        _
      %p349 = scmp.lt.s32.totalorder %s26, 2
      // Predicated region
      $region37: #{tpu_custom_call.1} parent=5 // pred_check
        %p350 = pneg %p349
      $region38: #{tpu_custom_call.1} parent=5 // pred_check_branch
        %352 = sbr.rel (%p350) target = $region40
      $region39: #{tpu_custom_call.1} parent=5 // pred_region
        // Predicated region
        $region41: #{tpu_custom_call.1} parent=39 // pred_check
          %p353 = pneg %p60
        $region42: #{tpu_custom_call.1} parent=39 // pred_check_branch
          %355 = sbr.rel (%p353) target = $region44
        $region43: #{tpu_custom_call.1} parent=39 // pred_region
          %s356 = sand.u32 %s50, 1
          %s357 = scalar_lea.sflag [#allocation6], %s356
          %s358 = sand.u32 %s50, 1
          %s359 = smul.addr %s358, 8
          %s360 = scalar_lea.vmem [#allocation5], %s359
          %362 = vsyncadd %s357, 0
          %s363 = sadd.s32 %s34, %s33
          %s364 = smul.addr %s363, 8
          %s365 = scalar_lea.hbm %s0, %s364
          %s367 = sshll.u32 %s365, 4
          %s368 = int_to_ptr.hbm [resolvable:$true] %s367
          %s369 = sshll.u32 %s360, 4
          %s370 = int_to_ptr.vmem [resolvable:$true] %s369
          %372 = dma.hbm_to_vmem [thread:$0]  %s368, 128, %s370, %s357
        $region44: #{tpu_custom_call.1} parent=39 // pred_fallthru
          _
        // Predicated region
        $region45: #{tpu_custom_call.1} parent=39 // pred_check
          %p373 = pneg %p86
        $region46: #{tpu_custom_call.1} parent=39 // pred_check_branch
          %375 = sbr.rel (%p373) target = $region48
        $region47: #{tpu_custom_call.1} parent=39 // pred_region
          %s376 = sand.u32 %s26, 1
          %s377 = scalar_lea.sflag [#allocation9], %s376
          %s378 = sand.u32 %s76, 1
          %s379 = smul.addr %s378, 8
          %s380 = scalar_lea.vmem [#allocation8], %s379
          %382 = vsyncadd %s377, 0
          %s383 = smul.addr %s33, 8
          %s384 = scalar_lea.hbm %s1, %s383
          %s386 = sshll.u32 %s384, 4
          %s387 = int_to_ptr.hbm [resolvable:$true] %s386
          %s388 = sshll.u32 %s380, 4
          %s389 = int_to_ptr.vmem [resolvable:$true] %s388
          %391 = dma.hbm_to_vmem [thread:$0]  %s387, 128, %s389, %s377
        $region48: #{tpu_custom_call.1} parent=39 // pred_fallthru
          _
        // Predicated region
        $region49: #{tpu_custom_call.1} parent=39 // pred_check
          %p392 = pneg %p112
        $region50: #{tpu_custom_call.1} parent=39 // pred_check_branch
          %394 = sbr.rel (%p392) target = $region52
        $region51: #{tpu_custom_call.1} parent=39 // pred_region
          %s395 = sand.u32 %s26, 1
          %s396 = scalar_lea.sflag [#allocation9], %s395
          %s397 = sand.u32 %s102, 1
          %s398 = smul.addr %s397, 8
          %s399 = scalar_lea.vmem [#allocation10], %s398
          %401 = vsyncadd %s396, 0
          %s402 = smul.addr %s33, 8
          %s403 = scalar_lea.hbm %s2, %s402
          %s405 = sshll.u32 %s403, 4
          %s406 = int_to_ptr.hbm [resolvable:$true] %s405
          %s407 = sshll.u32 %s399, 4
          %s408 = int_to_ptr.vmem [resolvable:$true] %s407
          %410 = dma.hbm_to_vmem [thread:$0]  %s406, 128, %s408, %s396
        $region52: #{tpu_custom_call.1} parent=39 // pred_fallthru
          _
      $region40: #{tpu_custom_call.1} parent=5 // pred_fallthru
        _
      %p411 = scmp.le.s32.totalorder 1, %s26
      %p412 = scmp.lt.s32.totalorder %s26, 3
      %p413 = pnand %p411, %p412
      %p414 = pneg %p413
      // Predicated region
      $region53: #{tpu_custom_call.1} parent=5 // pred_check
        _
      $region54: #{tpu_custom_call.1} parent=5 // pred_check_branch
        %416 = sbr.rel (%p413) target = $region56
      $region55: #{tpu_custom_call.1} parent=5 // pred_region
        %s417 = ssub.s32 %s26, 1
        %s418 = sand.u32 %s53, 1
        %s419 = scalar_lea.sflag [#allocation6], %s418
        %s420 = sand.u32 %s53, 1
        %s421 = smul.addr %s420, 8
        %s422 = scalar_lea.vmem [#allocation5], %s421
        // Predicated region
        $region57: #{tpu_custom_call.1} parent=55 // pred_check
          %p423 = pneg %p66
        $region58: #{tpu_custom_call.1} parent=55 // pred_check_branch
          %425 = sbr.rel (%p423) target = $region60
        $region59: #{tpu_custom_call.1} parent=55 // pred_region
          %427 = dma.done %s419, 128
        $region60: #{tpu_custom_call.1} parent=55 // pred_fallthru
          _
        %s428 = sand.u32 %s31, 1
        %s429 = scalar_lea.sflag [#allocation9], %s428
        %s430 = sand.u32 %s79, 1
        %s431 = smul.addr %s430, 8
        %s432 = scalar_lea.vmem [#allocation8], %s431
        // Predicated region
        $region61: #{tpu_custom_call.1} parent=55 // pred_check
          %p433 = pneg %p92
        $region62: #{tpu_custom_call.1} parent=55 // pred_check_branch
          %435 = sbr.rel (%p433) target = $region64
        $region63: #{tpu_custom_call.1} parent=55 // pred_region
          %437 = dma.done %s429, 128
        $region64: #{tpu_custom_call.1} parent=55 // pred_fallthru
          _
        %s438 = sand.u32 %s31, 1
        %s439 = scalar_lea.sflag [#allocation9], %s438
        %s440 = sand.u32 %s105, 1
        %s441 = smul.addr %s440, 8
        %s442 = scalar_lea.vmem [#allocation10], %s441
        // Predicated region
        $region65: #{tpu_custom_call.1} parent=55 // pred_check
          %p443 = pneg %p118
        $region66: #{tpu_custom_call.1} parent=55 // pred_check_branch
          %445 = sbr.rel (%p443) target = $region68
        $region67: #{tpu_custom_call.1} parent=55 // pred_region
          %447 = dma.done %s439, 128
        $region68: #{tpu_custom_call.1} parent=55 // pred_fallthru
          _
        // Predicated region
        $region69: #{tpu_custom_call.1} parent=55 // pred_check
          %p448 = pneg %p139
        $region70: #{tpu_custom_call.1} parent=55 // pred_check_branch
          %450 = sbr.rel (%p448) target = $region72
        $region71: #{tpu_custom_call.1} parent=55 // pred_region
          %452 = dma.done [#allocation12], 256
        $region72: #{tpu_custom_call.1} parent=55 // pred_fallthru
          _
        // Predicated region
        $region73: #{tpu_custom_call.1} parent=55 // pred_check
          %p453 = pneg %p160
        $region74: #{tpu_custom_call.1} parent=55 // pred_check_branch
          %455 = sbr.rel (%p453) target = $region76
        $region75: #{tpu_custom_call.1} parent=55 // pred_region
          %457 = dma.done [#allocation12], 256
        $region76: #{tpu_custom_call.1} parent=55 // pred_fallthru
          _
        // Predicated region
        $region77: #{tpu_custom_call.1} parent=55 // pred_check
          %p458 = pneg %p181
        $region78: #{tpu_custom_call.1} parent=55 // pred_check_branch
          %460 = sbr.rel (%p458) target = $region80
        $region79: #{tpu_custom_call.1} parent=55 // pred_region
          %462 = dma.done [#allocation15], 256
        $region80: #{tpu_custom_call.1} parent=55 // pred_fallthru
          _
        // Predicated region
        $region81: #{tpu_custom_call.1} parent=55 // pred_check
          %p463 = pneg %p202
        $region82: #{tpu_custom_call.1} parent=55 // pred_check_branch
          %465 = sbr.rel (%p463) target = $region84
        $region83: #{tpu_custom_call.1} parent=55 // pred_region
          %467 = dma.done [#allocation15], 256
        $region84: #{tpu_custom_call.1} parent=55 // pred_fallthru
          _
        %s468 = sand.u32 %s53, 1
        %s469 = scalar_lea.sflag [#allocation6], %s468
        %s470 = sand.u32 %s53, 1
        %s471 = smul.addr %s470, 8
        %s472 = scalar_lea.vmem [#allocation5], %s471
        %p473 = pneg %p66
        %p474 = pneg %p63
        %s475 = sand.u32 %s31, 1
        %s476 = scalar_lea.sflag [#allocation9], %s475
        %s477 = sand.u32 %s79, 1
        %s478 = smul.addr %s477, 8
        %s479 = scalar_lea.vmem [#allocation8], %s478
        %p480 = pneg %p92
        %p481 = pneg %p89
        %s482 = sand.u32 %s31, 1
        %s483 = scalar_lea.sflag [#allocation9], %s482
        %s484 = sand.u32 %s105, 1
        %s485 = smul.addr %s484, 8
        %s486 = scalar_lea.vmem [#allocation10], %s485
        %p487 = pneg %p118
        %p488 = pneg %p115
        %p489 = pneg %p139
        %p490 = pneg %p136
        %p491 = pneg %p160
        %p492 = pneg %p157
        %p493 = pneg %p181
        %p494 = pneg %p178
        %p495 = pneg %p202
        %p496 = pneg %p199
        %p497 = pneg %p223
        %p498 = pneg %p220
        %p499 = pneg %p244
        %p500 = pneg %p241
        %p501 = pneg %p272
        %p502 = pneg %p269
        %s503 = sand.u32 %s259, 1
        %s504 = scalar_lea.sflag [#allocation7], %s503
        %s505 = sand.u32 %s259, 1
        %s506 = smul.addr %s505, 8
        %s507 = scalar_lea.vmem [#allocation17], %s506
        %p509 = scmp.eq.s32.totalorder %s36, 0
        // Predicated region
        $region85: #{tpu_custom_call.1} parent=55 // pred_check
          %p510 = pneg %p509
        $region86: #{tpu_custom_call.1} parent=55 // pred_check_branch
          %512 = sbr.rel (%p510) target = $region88
        $region87: #{tpu_custom_call.1} parent=55 // pred_region
          %v513 = vld [vmem:[%s432] sm:$0xff]
          %v514 = vpack.c.bf16 %v513, %v513
          %v515 = vld [vmem:[%s442] sm:$0xff]
          %v516 = vpack.c.bf16 %v515, %v515
          %v517 = vld [vmem:[#allocation13] sm:$0xf]
          %v518 = vld [vmem:[#allocation13 + $0x4] sm:$0xf]
          %v519 = vld [vmem:[#allocation13 + $0x8] sm:$0xf]
          %v520 = vld [vmem:[#allocation13 + $0xc] sm:$0xf]
          %v521 = vld [vmem:[%s7 + $0x1] sm:$0x1]
          %v522 = vperm.slane %v521, 0
          %v527 = vunpack.c.l.b16 %v517
          %v528 = vunpack.c.l.b16 %v518
          %v529 = vunpack.c.l.b16 %v519
          %v530 = vunpack.c.l.b16 %v520
          %v531 = vpack.c.b16 %v528, %v527
          %v532 = vpack.c.b16 %v530, %v529
          %vm535 = vcmask 261120
          %v537 = vsel %vm535, %v514, 0
          %539 = vmatpush.bf16.msra.mxu0 0
          %540 = vmatpush.bf16.msra.mxu0 0
          %541 = vmatpush.bf16.msra.mxu0 0
          %542 = vmatpush.bf16.msra.mxu0 0
          %543 = vmatpush.bf16.msra.mxu0 0
          %544 = vmatpush.bf16.msra.mxu0 0
          %545 = vmatpush.bf16.msra.mxu0 %v532
          %546 = vmatpush.bf16.msra.mxu0 %v531
          %547 = vmatmul.bf16.gmra.mxu0 %v537
          %v548 = vpop.f32.mrf.mxu0
          %v549 = vadd.f32 %v522, %v548
          %v550 = vpop.f32.mrf.mxu0
          %551 = vdwg.mxu0
          %v552 = vpack.c.bf16 %v549, %v549
          %vm553 = vcmask 257024
          %554 = vst.msk [vmem:[#allocation2] sm:$0xf] %vm553, %v552
          %v555 = vld [vmem:[#allocation14] sm:$0xf]
          %v556 = vld [vmem:[#allocation14 + $0x4] sm:$0xf]
          %v557 = vld [vmem:[#allocation14 + $0x8] sm:$0xf]
          %v558 = vld [vmem:[#allocation14 + $0xc] sm:$0xf]
          %v559 = vld [vmem:[%s7 + $0x2] sm:$0x1]
          %v560 = vperm.slane %v559, 0
          %v565 = vunpack.c.l.b16 %v555
          %v566 = vunpack.c.l.b16 %v556
          %v567 = vunpack.c.l.b16 %v557
          %v568 = vunpack.c.l.b16 %v558
          %v569 = vpack.c.b16 %v566, %v565
          %v570 = vpack.c.b16 %v568, %v567
          %v574 = vsel %vm535, %v516, 0
          %576 = vmatpush.bf16.msra.mxu0 0
          %577 = vmatpush.bf16.msra.mxu0 0
          %578 = vmatpush.bf16.msra.mxu0 0
          %579 = vmatpush.bf16.msra.mxu0 0
          %580 = vmatpush.bf16.msra.mxu0 0
          %581 = vmatpush.bf16.msra.mxu0 0
          %582 = vmatpush.bf16.msra.mxu0 %v570
          %583 = vmatpush.bf16.msra.mxu0 %v569
          %584 = vmatmul.bf16.gmra.mxu0 %v574
          %v585 = vpop.f32.mrf.mxu0
          %v586 = vadd.f32 %v560, %v585
          %v587 = vpop.f32.mrf.mxu0
          %588 = vdwg.mxu0
          %v589 = vpack.c.bf16 %v586, %v586
          %590 = vst.msk [vmem:[#allocation3] sm:$0xf] %vm553, %v589
        $region88: #{tpu_custom_call.1} parent=55 // pred_fallthru
          _
        %v591 = vld [vmem:[%s422] sm:$0xff]
        %v592 = vpack.c.bf16 %v591, %v591
        %v593 = vld [vmem:[#allocation11] sm:$0xf]
        %v594 = vld [vmem:[#allocation11 + $0x4] sm:$0xf]
        %v595 = vld [vmem:[#allocation11 + $0x8] sm:$0xf]
        %v596 = vld [vmem:[#allocation11 + $0xc] sm:$0xf]
        %v597 = vld [vmem:[%s7] sm:$0x1]
        %v598 = vperm.slane %v597, 0
        %v603 = vunpack.c.l.b16 %v593
        %v604 = vunpack.c.l.b16 %v594
        %v605 = vunpack.c.l.b16 %v595
        %v606 = vunpack.c.l.b16 %v596
        %v607 = vpack.c.b16 %v604, %v603
        %v608 = vpack.c.b16 %v606, %v605
        %vm611 = vcmask 261120
        %v613 = vsel %vm611, %v592, 0
        %615 = vmatpush.bf16.msra.mxu0 0
        %616 = vmatpush.bf16.msra.mxu0 0
        %617 = vmatpush.bf16.msra.mxu0 0
        %618 = vmatpush.bf16.msra.mxu0 0
        %619 = vmatpush.bf16.msra.mxu0 0
        %620 = vmatpush.bf16.msra.mxu0 0
        %621 = vmatpush.bf16.msra.mxu0 %v608
        %622 = vmatpush.bf16.msra.mxu0 %v607
        %623 = vmatmul.bf16.gmra.mxu0 %v613
        %v624 = vpop.f32.mrf.mxu0
        %v625 = vadd.f32 %v598, %v624
        %v626 = vpop.f32.mrf.mxu0
        %627 = vdwg.mxu0
        %v628 = vpack.c.bf16 %v625, %v625
        %v629 = vld [vmem:[#allocation2] sm:$0xf]
        %v630 = vld [vmem:[#allocation3] sm:$0xf]
        %vm631 = vcmask 64512
        %v633 = vsel %vm631, %v628, 0
        %v636 = vsel %vm631, %v629, 0
        %638 = vmatpush.bf16.xpose.msra.mxu0 0
        %639 = vmatpush.bf16.xpose.msra.mxu0 0
        %640 = vmatpush.bf16.xpose.msra.mxu0 0
        %641 = vmatpush.bf16.xpose.msra.mxu0 0
        %642 = vmatpush.bf16.xpose.msra.mxu0 0
        %643 = vmatpush.bf16.xpose.msra.mxu0 0
        %644 = vmatpush.bf16.xpose.msra.mxu0 0
        %645 = vmatpush.bf16.xpose.msra.mxu0 %v636
        %646 = vmatmul.bf16.gmra.mxu0 %v633
        %v647 = vpop.f32.mrf.mxu0
        %v648 = vadd.f32 0.0, %v647
        %v649 = vpop.f32.mrf.mxu0
        %650 = vdwg.mxu0
        %v651 = vsel %vm631, %v648, -inf
        %652 = vmax.xlane.f32.xlu0 %v651
        %v653 = vpop.xlane.xlu0 %652
        %v654 = vsub.f32 %v648, %v653
        %v655 = vmul.f32 %v654, 1.442695
        %v656 = vpow.pop %v655
        %v657 = vsel %vm631, %v656, 0.0
        %658 = vadd.xlane.f32.xlu0 %v657
        %v659 = vpop.xlane.xlu0 %658
        %v660 = vrcp.pop %v659
        %v661 = vmul.f32 %v659, %v660
        %v662 = vsub.f32 1.0, %v661
        %v663 = vmul.f32 %v660, %v662
        %v664 = vadd.f32 %v660, %v663
        %vm665 = vweird.f32 %v659
        %vm666 = vweird.f32 %v660
        %vm667 = vmor %vm665, %vm666
        %v668 = vsel %vm667, %v660, %v664
        %v669 = vand.u32 2147483647, %v659
        %vm670 = vcmp.eq.f32.partialorder %v669, 8.507059e+37
        %v671 = vand.u32 %v659, 2147483648
        %v672 = vor.u32 1.1754944e-38, %v671
        %v673 = vsel %vm670, %v672, %v668
        %v674 = vmul.f32 %v656, %v673
        %v675 = vpack.c.bf16 %v674, %v674
        %v677 = vsel %vm631, %v675, 0
        %vm679 = vcmask 1043456
        %v681 = vsel %vm679, %v630, 0
        %683 = vmatpush.bf16.msra.mxu0 0
        %684 = vmatpush.bf16.msra.mxu0 0
        %685 = vmatpush.bf16.msra.mxu0 0
        %686 = vmatpush.bf16.msra.mxu0 0
        %687 = vmatpush.bf16.msra.mxu0 0
        %688 = vmatpush.bf16.msra.mxu0 0
        %689 = vmatpush.bf16.msra.mxu0 0
        %690 = vmatpush.bf16.msra.mxu0 %v681
        %691 = vmatmul.bf16.gmra.mxu0 %v677
        %v692 = vpop.f32.mrf.mxu0
        %v693 = vadd.f32 0.0, %v692
        %v694 = vpop.f32.mrf.mxu0
        %695 = vdwg.mxu0
        %v696 = vpack.c.bf16 %v693, %v693
        %vm697 = vcmask 60416
        %698 = vst.msk [vmem:[#allocation4] sm:$0xf] %vm697, %v696
        %v699 = vld [vmem:[#allocation2] sm:$0xf]
        %v700 = vld [vmem:[#allocation3] sm:$0xf]
        %v702 = vunpack.c.l.b16 %v628
        %v703 = vpack.c.b16 %v702, %v702
        %704 = vrot.lane.b32.xlu0 %v703, 120
        %v705 = vpop.permute.xlu0 %704
        %v707 = vunpack.c.l.b16 %v699
        %v708 = vpack.c.b16 %v707, %v707
        %709 = vrot.lane.b32.xlu0 %v708, 120
        %v710 = vpop.permute.xlu0 %709
        %v712 = vsel %vm631, %v705, 0
        %v715 = vsel %vm631, %v710, 0
        %717 = vmatpush.bf16.xpose.msra.mxu0 0
        %718 = vmatpush.bf16.xpose.msra.mxu0 0
        %719 = vmatpush.bf16.xpose.msra.mxu0 0
        %720 = vmatpush.bf16.xpose.msra.mxu0 0
        %721 = vmatpush.bf16.xpose.msra.mxu0 0
        %722 = vmatpush.bf16.xpose.msra.mxu0 0
        %723 = vmatpush.bf16.xpose.msra.mxu0 0
        %724 = vmatpush.bf16.xpose.msra.mxu0 %v715
        %725 = vmatmul.bf16.gmra.mxu0 %v712
        %v726 = vpop.f32.mrf.mxu0
        %v727 = vadd.f32 0.0, %v726
        %v728 = vpop.f32.mrf.mxu0
        %729 = vdwg.mxu0
        %v730 = vsel %vm631, %v727, -inf
        %731 = vmax.xlane.f32.xlu0 %v730
        %v732 = vpop.xlane.xlu0 %731
        %v733 = vsub.f32 %v727, %v732
        %v734 = vmul.f32 %v733, 1.442695
        %v735 = vpow.pop %v734
        %v736 = vsel %vm631, %v735, 0.0
        %737 = vadd.xlane.f32.xlu0 %v736
        %v738 = vpop.xlane.xlu0 %737
        %v739 = vrcp.pop %v738
        %v740 = vmul.f32 %v738, %v739
        %v741 = vsub.f32 1.0, %v740
        %v742 = vmul.f32 %v739, %v741
        %v743 = vadd.f32 %v739, %v742
        %vm744 = vweird.f32 %v738
        %vm745 = vweird.f32 %v739
        %vm746 = vmor %vm744, %vm745
        %v747 = vsel %vm746, %v739, %v743
        %v748 = vand.u32 2147483647, %v738
        %vm749 = vcmp.eq.f32.partialorder %v748, 8.507059e+37
        %v750 = vand.u32 %v738, 2147483648
        %v751 = vor.u32 1.1754944e-38, %v750
        %v752 = vsel %vm749, %v751, %v747
        %v753 = vmul.f32 %v735, %v752
        %v754 = vpack.c.bf16 %v753, %v753
        %v756 = vunpack.c.l.b16 %v700
        %v757 = vpack.c.b16 %v756, %v756
        %758 = vrot.lane.b32.xlu0 %v757, 120
        %v759 = vpop.permute.xlu0 %758
        %v761 = vsel %vm631, %v754, 0
        %v764 = vsel %vm679, %v759, 0
        %766 = vmatpush.bf16.msra.mxu0 0
        %767 = vmatpush.bf16.msra.mxu0 0
        %768 = vmatpush.bf16.msra.mxu0 0
        %769 = vmatpush.bf16.msra.mxu0 0
        %770 = vmatpush.bf16.msra.mxu0 0
        %771 = vmatpush.bf16.msra.mxu0 0
        %772 = vmatpush.bf16.msra.mxu0 0
        %773 = vmatpush.bf16.msra.mxu0 %v764
        %774 = vmatmul.bf16.gmra.mxu0 %v761
        %v775 = vpop.f32.mrf.mxu0
        %v776 = vadd.f32 0.0, %v775
        %v777 = vpop.f32.mrf.mxu0
        %778 = vdwg.mxu0
        %v779 = vpack.c.bf16 %v776, %v776
        %781 = vrot.lane.b32.xlu0 %v779, 8
        %v782 = vpop.permute.xlu0 %781
        %vm784 = vcmask 126016
        %785 = vst.msk [vmem:[#allocation4] sm:$0xf] %vm784, %v782
        %v786 = vld [vmem:[#allocation2] sm:$0xf]
        %v787 = vld [vmem:[#allocation3] sm:$0xf]
        %788 = vrot.lane.b32.xlu0 %v703, 112
        %v789 = vpop.permute.xlu0 %788
        %v791 = vunpack.c.l.b16 %v786
        %v792 = vpack.c.b16 %v791, %v791
        %793 = vrot.lane.b32.xlu0 %v792, 112
        %v794 = vpop.permute.xlu0 %793
        %v796 = vsel %vm631, %v789, 0
        %v799 = vsel %vm631, %v794, 0
        %801 = vmatpush.bf16.xpose.msra.mxu0 0
        %802 = vmatpush.bf16.xpose.msra.mxu0 0
        %803 = vmatpush.bf16.xpose.msra.mxu0 0
        %804 = vmatpush.bf16.xpose.msra.mxu0 0
        %805 = vmatpush.bf16.xpose.msra.mxu0 0
        %806 = vmatpush.bf16.xpose.msra.mxu0 0
        %807 = vmatpush.bf16.xpose.msra.mxu0 0
        %808 = vmatpush.bf16.xpose.msra.mxu0 %v799
        %809 = vmatmul.bf16.gmra.mxu0 %v796
        %v810 = vpop.f32.mrf.mxu0
        %v811 = vadd.f32 0.0, %v810
        %v812 = vpop.f32.mrf.mxu0
        %813 = vdwg.mxu0
        %v814 = vsel %vm631, %v811, -inf
        %815 = vmax.xlane.f32.xlu0 %v814
        %v816 = vpop.xlane.xlu0 %815
        %v817 = vsub.f32 %v811, %v816
        %v818 = vmul.f32 %v817, 1.442695
        %v819 = vpow.pop %v818
        %v820 = vsel %vm631, %v819, 0.0
        %821 = vadd.xlane.f32.xlu0 %v820
        %v822 = vpop.xlane.xlu0 %821
        %v823 = vrcp.pop %v822
        %v824 = vmul.f32 %v822, %v823
        %v825 = vsub.f32 1.0, %v824
        %v826 = vmul.f32 %v823, %v825
        %v827 = vadd.f32 %v823, %v826
        %vm828 = vweird.f32 %v822
        %vm829 = vweird.f32 %v823
        %vm830 = vmor %vm828, %vm829
        %v831 = vsel %vm830, %v823, %v827
        %v832 = vand.u32 2147483647, %v822
        %vm833 = vcmp.eq.f32.partialorder %v832, 8.507059e+37
        %v834 = vand.u32 %v822, 2147483648
        %v835 = vor.u32 1.1754944e-38, %v834
        %v836 = vsel %vm833, %v835, %v831
        %v837 = vmul.f32 %v819, %v836
        %v838 = vpack.c.bf16 %v837, %v837
        %v840 = vunpack.c.l.b16 %v787
        %v841 = vpack.c.b16 %v840, %v840
        %842 = vrot.lane.b32.xlu0 %v841, 112
        %v843 = vpop.permute.xlu0 %842
        %v845 = vsel %vm631, %v838, 0
        %v848 = vsel %vm679, %v843, 0
        %850 = vmatpush.bf16.msra.mxu0 0
        %851 = vmatpush.bf16.msra.mxu0 0
        %852 = vmatpush.bf16.msra.mxu0 0
        %853 = vmatpush.bf16.msra.mxu0 0
        %854 = vmatpush.bf16.msra.mxu0 0
        %855 = vmatpush.bf16.msra.mxu0 0
        %856 = vmatpush.bf16.msra.mxu0 0
        %857 = vmatpush.bf16.msra.mxu0 %v848
        %858 = vmatmul.bf16.gmra.mxu0 %v845
        %v859 = vpop.f32.mrf.mxu0
        %v860 = vadd.f32 0.0, %v859
        %v861 = vpop.f32.mrf.mxu0
        %862 = vdwg.mxu0
        %v863 = vpack.c.bf16 %v860, %v860
        %865 = vrot.lane.b32.xlu0 %v863, 16
        %v866 = vpop.permute.xlu0 %865
        %vm868 = vcmask 191616
        %869 = vst.msk [vmem:[#allocation4] sm:$0xf] %vm868, %v866
        %v870 = vld [vmem:[#allocation2] sm:$0xf]
        %v871 = vld [vmem:[#allocation3] sm:$0xf]
        %872 = vrot.lane.b32.xlu0 %v703, 104
        %v873 = vpop.permute.xlu0 %872
        %v875 = vunpack.c.l.b16 %v870
        %v876 = vpack.c.b16 %v875, %v875
        %877 = vrot.lane.b32.xlu0 %v876, 104
        %v878 = vpop.permute.xlu0 %877
        %v880 = vsel %vm631, %v873, 0
        %v883 = vsel %vm631, %v878, 0
        %885 = vmatpush.bf16.xpose.msra.mxu0 0
        %886 = vmatpush.bf16.xpose.msra.mxu0 0
        %887 = vmatpush.bf16.xpose.msra.mxu0 0
        %888 = vmatpush.bf16.xpose.msra.mxu0 0
        %889 = vmatpush.bf16.xpose.msra.mxu0 0
        %890 = vmatpush.bf16.xpose.msra.mxu0 0
        %891 = vmatpush.bf16.xpose.msra.mxu0 0
        %892 = vmatpush.bf16.xpose.msra.mxu0 %v883
        %893 = vmatmul.bf16.gmra.mxu0 %v880
        %v894 = vpop.f32.mrf.mxu0
        %v895 = vadd.f32 0.0, %v894
        %v896 = vpop.f32.mrf.mxu0
        %897 = vdwg.mxu0
        %v898 = vsel %vm631, %v895, -inf
        %899 = vmax.xlane.f32.xlu0 %v898
        %v900 = vpop.xlane.xlu0 %899
        %v901 = vsub.f32 %v895, %v900
        %v902 = vmul.f32 %v901, 1.442695
        %v903 = vpow.pop %v902
        %v904 = vsel %vm631, %v903, 0.0
        %905 = vadd.xlane.f32.xlu0 %v904
        %v906 = vpop.xlane.xlu0 %905
        %v907 = vrcp.pop %v906
        %v908 = vmul.f32 %v906, %v907
        %v909 = vsub.f32 1.0, %v908
        %v910 = vmul.f32 %v907, %v909
        %v911 = vadd.f32 %v907, %v910
        %vm912 = vweird.f32 %v906
        %vm913 = vweird.f32 %v907
        %vm914 = vmor %vm912, %vm913
        %v915 = vsel %vm914, %v907, %v911
        %v916 = vand.u32 2147483647, %v906
        %vm917 = vcmp.eq.f32.partialorder %v916, 8.507059e+37
        %v918 = vand.u32 %v906, 2147483648
        %v919 = vor.u32 1.1754944e-38, %v918
        %v920 = vsel %vm917, %v919, %v915
        %v921 = vmul.f32 %v903, %v920
        %v922 = vpack.c.bf16 %v921, %v921
        %v924 = vunpack.c.l.b16 %v871
        %v925 = vpack.c.b16 %v924, %v924
        %926 = vrot.lane.b32.xlu0 %v925, 104
        %v927 = vpop.permute.xlu0 %926
        %v929 = vsel %vm631, %v922, 0
        %v932 = vsel %vm679, %v927, 0
        %934 = vmatpush.bf16.msra.mxu0 0
        %935 = vmatpush.bf16.msra.mxu0 0
        %936 = vmatpush.bf16.msra.mxu0 0
        %937 = vmatpush.bf16.msra.mxu0 0
        %938 = vmatpush.bf16.msra.mxu0 0
        %939 = vmatpush.bf16.msra.mxu0 0
        %940 = vmatpush.bf16.msra.mxu0 0
        %941 = vmatpush.bf16.msra.mxu0 %v932
        %942 = vmatmul.bf16.gmra.mxu0 %v929
        %v943 = vpop.f32.mrf.mxu0
        %v944 = vadd.f32 0.0, %v943
        %v945 = vpop.f32.mrf.mxu0
        %946 = vdwg.mxu0
        %v947 = vpack.c.bf16 %v944, %v944
        %949 = vrot.lane.b32.xlu0 %v947, 24
        %v950 = vpop.permute.xlu0 %949
        %vm952 = vcmask 257216
        %953 = vst.msk [vmem:[#allocation4] sm:$0xf] %vm952, %v950
        %v954 = vld [vmem:[#allocation4] sm:$0xf]
        %v955 = vld [vmem:[#allocation16] sm:$0xf]
        %v956 = vld [vmem:[#allocation16 + $0x4] sm:$0xf]
        %v957 = vld [vmem:[#allocation16 + $0x8] sm:$0xf]
        %v958 = vld [vmem:[#allocation16 + $0xc] sm:$0xf]
        %v959 = vld [vmem:[%s8] sm:$0x1]
        %v961 = vperm.slane %v959, 0
        %v967 = vunpack.c.l.b16 %v955
        %v968 = vunpack.c.l.b16 %v956
        %v969 = vunpack.c.l.b16 %v957
        %v970 = vunpack.c.l.b16 %v958
        %v971 = vpack.c.b16 %v968, %v967
        %v972 = vpack.c.b16 %v970, %v969
        %v976 = vsel %vm611, %v954, 0
        %978 = vmatpush.bf16.msra.mxu0 0
        %979 = vmatpush.bf16.msra.mxu0 0
        %980 = vmatpush.bf16.msra.mxu0 0
        %981 = vmatpush.bf16.msra.mxu0 0
        %982 = vmatpush.bf16.msra.mxu0 0
        %983 = vmatpush.bf16.msra.mxu0 0
        %984 = vmatpush.bf16.msra.mxu0 %v972
        %985 = vmatpush.bf16.msra.mxu0 %v971
        %986 = vmatmul.bf16.gmra.mxu0 %v976
        %v987 = vpop.f32.mrf.mxu0
        %v988 = vadd.f32 %v961, %v987
        %v989 = vpop.f32.mrf.mxu0
        %990 = vdwg.mxu0
        %991 = vst.msk [vmem:[%s507] sm:$0xff] %vm611, %v988
        %s992 = sand.u32 %s259, 1
        %s993 = scalar_lea.sflag [#allocation7], %s992
        %s994 = sand.u32 %s259, 1
        %s995 = smul.addr %s994, 8
        %s996 = scalar_lea.vmem [#allocation17], %s995
        // Predicated region
        $region89: #{tpu_custom_call.1} parent=55 // pred_check
          %p997 = pneg %p269
        $region90: #{tpu_custom_call.1} parent=55 // pred_check_branch
          %999 = sbr.rel (%p997) target = $region92
        $region91: #{tpu_custom_call.1} parent=55 // pred_region
          %1001 = vsyncadd %s993, 0
          %s1002 = sadd.s32 %s36, %s35
          %s1003 = smul.addr %s1002, 8
          %s1004 = scalar_lea.hbm %s9, %s1003
          %s1006 = sshll.u32 %s996, 4
          %s1007 = int_to_ptr.vmem [resolvable:$true] %s1006
          %s1008 = sshll.u32 %s1004, 4
          %s1009 = int_to_ptr.hbm [resolvable:$true] %s1008
          %1011 = dma.vmem_to_hbm [thread:$0]  %s1007, 128, %s1009, %s993
        $region92: #{tpu_custom_call.1} parent=55 // pred_fallthru
          _
      $region56: #{tpu_custom_call.1} parent=5 // pred_fallthru
        _
      %p1012 = scmp.le.s32.totalorder 2, %s26
      // Predicated region
      $region93: #{tpu_custom_call.1} parent=5 // pred_check
        %p1013 = pneg %p1012
      $region94: #{tpu_custom_call.1} parent=5 // pred_check_branch
        %1015 = sbr.rel (%p1013) target = $region96
      $region95: #{tpu_custom_call.1} parent=5 // pred_region
        %s1016 = ssub.s32 %s26, 2
        // Predicated region
        $region97: #{tpu_custom_call.1} parent=95 // pred_check
          %p1017 = pneg %p275
        $region98: #{tpu_custom_call.1} parent=95 // pred_check_branch
          %1019 = sbr.rel (%p1017) target = $region100
        $region99: #{tpu_custom_call.1} parent=95 // pred_region
          %s1020 = sand.u32 %s260, 1
          %s1021 = scalar_lea.sflag [#allocation7], %s1020
          %s1022 = sand.u32 %s260, 1
          %s1023 = smul.addr %s1022, 8
          %s1024 = scalar_lea.vmem [#allocation17], %s1023
          %1026 = dma.done %s1021, 128
        $region100: #{tpu_custom_call.1} parent=95 // pred_fallthru
          _
      $region96: #{tpu_custom_call.1} parent=5 // pred_fallthru
        _
    $region6: #{tpu_custom_call.1} parent=1 // loop_footer
      %s30 = sadd.s32 1, %s26
    $region7: #{tpu_custom_call.1} parent=1 // loop_footer_branch
      %25 = sbr.rel target = $region3
    $region8: #{tpu_custom_call.1} parent=1 // loop_exit
      _
    %1027 = vsyncpa [#allocation6], 1
    %s1028 = scalar_lea.sflag [#allocation6], 1
    %1029 = vsyncpa %s1028, 1
    %1030 = vsyncpa [#allocation9], 1
    %s1031 = scalar_lea.sflag [#allocation9], 1
    %1032 = vsyncpa %s1031, 1
    %1033 = vsyncpa [#allocation12], 1
    %1034 = vsyncpa [#allocation15], 1
    %1035 = vsyncpa [#allocation7], 1
    %s1036 = scalar_lea.sflag [#allocation7], 1
    %1037 = vsyncpa %s1036, 1

</llo_original>
